<compile_context>
chip_gen: v7x
topology: tpu7x:2x2x1
jax: 0.10.0
libtpu: 0.0.40
codegen_flags: <defaults>
</compile_context>

<pallas_src>
import jax
import jax.numpy as jnp
import numpy as np
from jax.experimental import pallas as pl
from jax.experimental.pallas import tpu as pltpu

HIDDEN = 150       # logical Score() hidden_dim (PyTorch default)
HIDDEN_PAD = 256   # zero-padded, lane/MXU-aligned hidden width


def _round_up(x, m):
    return ((x + m - 1) // m) * m


# --------------------------------------------------------------------------
# Score MLP kernel:  rows of [R, D] -> [R]   (grid over row tiles)
# Linear -> ReLU -> Linear -> ReLU -> Linear(->1); dropout = identity at inference.
# --------------------------------------------------------------------------
def _score_kernel(x_ref, w1_ref, b1_ref, w2_ref, b2_ref, w3_ref, b3_ref, o_ref):
    x = x_ref[...]                                                     # [TILE_R, D]
    h1 = jnp.maximum(jnp.dot(x, w1_ref[...],
                             preferred_element_type=jnp.float32) + b1_ref[...], 0.0)
    h2 = jnp.maximum(jnp.dot(h1, w2_ref[...],
                             preferred_element_type=jnp.float32) + b2_ref[...], 0.0)
    # Final projection on the VPU (lane reduce) instead of a width-1 MXU matmul.
    o_ref[0, :] = jnp.sum(h2 * w3_ref[...], axis=-1) + b3_ref[0]


def score_mlp(x, params):
    """Score MLP applied to every row of x: [B, N, D] -> [B, N]."""
    B, N, D = x.shape
    w1, b1, w2, b2, w3, b3 = params
    H = w1.shape[1]

    R = B * N
    tile_r = 256 if R >= 256 else _round_up(R, 8)
    r_pad = _round_up(R, tile_r)
    xf = x.reshape(R, D)
    if r_pad != R:
        xf = jnp.pad(xf, ((0, r_pad - R), (0, 0)))

    out = pl.pallas_call(
        _score_kernel,
        out_shape=jax.ShapeDtypeStruct((1, r_pad), jnp.float32),
        grid_spec=pltpu.PrefetchScalarGridSpec(
            num_scalar_prefetch=0,
            grid=(r_pad // tile_r,),
            in_specs=[
                pl.BlockSpec((tile_r, D), lambda r: (r, 0)),
                pl.BlockSpec((D, H), lambda r: (0, 0)),
                pl.BlockSpec((1, H), lambda r: (0, 0)),
                pl.BlockSpec((H, H), lambda r: (0, 0)),
                pl.BlockSpec((1, H), lambda r: (0, 0)),
                pl.BlockSpec((1, H), lambda r: (0, 0)),
                pl.BlockSpec(memory_space=pltpu.MemorySpace.SMEM),     # scalar bias b3
            ],
            out_specs=pl.BlockSpec((1, tile_r), lambda r: (0, r)),
        ),
        compiler_params=pltpu.CompilerParams(dimension_semantics=("parallel",)),
    )(xf, w1, b1, w2, b2, w3, b3)
    return out[0, :R].reshape(B, N)


# --------------------------------------------------------------------------
# Pairwise kernel: per (batch, i-tile, j-tile) block it
#   * computes the pair MLP with layer 1 factored as
#       h1[i,j] = relu(g_i@w1a + g_j@w1b + (g_i*g_j)@w1c + b1),
#   * combines mean(m_i, m_j, p_ij) using precomputed mention scores
#     (final pair bias folded into cbias) and clamps to [0, 1].
# Output block is lane-dense [TILE_I, TILE_J].
# --------------------------------------------------------------------------
def _pair_kernel(gi_ref, gj_ref, mi_ref, mj_ref,
                 w1a_ref, w1b_ref, w1c_ref, b1p_ref, w2p_ref, b2p_ref, w3p_ref,
                 cbias_ref, o_ref):
    gi = gi_ref[0]                                   # [TI, G]
    gj = gj_ref[0]                                   # [TJ, G]
    ti, G = gi.shape
    tj = gj.shape[0]

    # ---- pair MLP layer 1, algebraically factored ----
    a_i = jnp.dot(gi, w1a_ref[...], preferred_element_type=jnp.float32)          # [TI, H]
    b_j = jnp.dot(gj, w1b_ref[...], preferred_element_type=jnp.float32)          # [TJ, H]
    prod = (gi[:, None, :] * gj[None, :, :]).reshape(ti * tj, G)                 # only S^2 term
    c_ij = jnp.dot(prod, w1c_ref[...], preferred_element_type=jnp.float32)       # [TI*TJ, H]
    H = c_ij.shape[-1]

    h1 = jnp.maximum(c_ij.reshape(ti, tj, H) + a_i[:, None, :] + b_j[None, :, :]
                     + b1p_ref[...], 0.0)                                        # [TI, TJ, H]
    h2 = jnp.maximum(jnp.dot(h1.reshape(ti * tj, H), w2p_ref[...],
                             preferred_element_type=jnp.float32)
                     + b2p_ref[...], 0.0)                                        # [TI*TJ, H]
    p = jnp.sum(h2.reshape(ti, tj, H) * w3p_ref[...], axis=-1)                   # [TI, TJ]

    # ---- mean(m_i, m_j, p_ij) + folded pair bias, clamp(0, 1), lane-dense store ----
    out = (p + mi_ref[0] + mj_ref[0]) * (1.0 / 3.0) + cbias_ref[0]
    o_ref[0] = jnp.clip(out, 0.0, 1.0)


def pair_score(g, m, pair_params):
    """g: [B,S,3E], m: [B,S] mention scores -> clamp(mean(m_i, m_j, p_ij), 0, 1) as [B,S,S]."""
    B, S, G = g.shape
    w1p, b1p, w2p, b2p, w3p, b3p = pair_params
    H = w1p.shape[1]
    assert w1p.shape[0] == 3 * G

    # Pre-split pair layer-1 weight so the kernel never slices across sublane tiles.
    w1a, w1b, w1c = w1p[:G], w1p[G:2 * G], w1p[2 * G:]
    # Fold the final pair-layer scalar bias into one SMEM constant.
    cbias = (b3p / 3.0).astype(jnp.float32).reshape(1)

    tile_j = 128 if S >= 128 else _round_up(S, 8)                    # lane-dense output cols
    s_pad = _round_up(S, tile_j)
    tile_i = 16 if s_pad % 16 == 0 else 8
    if s_pad != S:
        g = jnp.pad(g, ((0, 0), (0, s_pad - S), (0, 0)))
        m = jnp.pad(m, ((0, 0), (0, s_pad - S)))
    m_col = m[:, :, None]                                            # [B, s_pad, 1]
    m_row = m[:, None, :]                                            # [B, 1, s_pad]

    grid = (B, s_pad // tile_i, s_pad // tile_j)
    wspec = lambda shape: pl.BlockSpec(shape, lambda b, i, j: (0, 0))

    out = pl.pallas_call(
        _pair_kernel,
        out_shape=jax.ShapeDtypeStruct((B, s_pad, s_pad), jnp.float32),
        grid_spec=pltpu.PrefetchScalarGridSpec(
            num_scalar_prefetch=0,
            grid=grid,
            in_specs=[
                pl.BlockSpec((1, tile_i, G), lambda b, i, j: (b, i, 0)),   # g_i tile
                pl.BlockSpec((1, tile_j, G), lambda b, i, j: (b, j, 0)),   # g_j tile
                pl.BlockSpec((1, tile_i, 1), lambda b, i, j: (b, i, 0)),   # m_i column
                pl.BlockSpec((1, 1, tile_j), lambda b, i, j: (b, 0, j)),   # m_j row
                wspec((G, H)), wspec((G, H)), wspec((G, H)),
                wspec((1, H)), wspec((H, H)), wspec((1, H)), wspec((1, H)),
                pl.BlockSpec(memory_space=pltpu.MemorySpace.SMEM),         # folded bias
            ],
            out_specs=pl.BlockSpec((1, tile_i, tile_j), lambda b, i, j: (b, i, j)),
        ),
        compiler_params=pltpu.CompilerParams(
            dimension_semantics=("parallel", "parallel", "parallel")),
    )(g, g, m_col, m_row, w1a, w1b, w1c, b1p, w2p, b2p, w3p, cbias)
    return out[:, :S, :S]


# --------------------------------------------------------------------------
# Plain-JAX glue: span (TokenRange) gathering. TokenRange(start, end) inclusive.
# --------------------------------------------------------------------------
def build_span_embeds(embeds, attns, starts, ends):
    """embeds: [B,T,E], attns: [B,T,1], starts/ends: [B,S] int32 -> g_i [B,S,3E]."""
    B, T, E = embeds.shape
    tok = jnp.arange(T)[None, None, :]                                   # [1,1,T]
    mask = (tok >= starts[:, :, None]) & (tok <= ends[:, :, None])       # [B,S,T]
    weighted = jnp.einsum("bst,bte->bse", mask.astype(embeds.dtype),
                          embeds * attns)                                # attn-weighted sum
    start_e = jnp.take_along_axis(embeds, starts[:, :, None], axis=1)    # [B,S,E]
    end_e = jnp.take_along_axis(embeds, ends[:, :, None], axis=1)        # [B,S,E]
    return jnp.concatenate([start_e, end_e, weighted], axis=-1)          # [B,S,3E]


def pad_score_params(params, h_pad=HIDDEN_PAD):
    """Zero-pad the Score MLP hidden dim to a lane-aligned width (numerically exact)."""
    w1, b1, w2, b2, w3, b3 = params
    p = h_pad - w1.shape[1]
    return (jnp.pad(w1, ((0, 0), (0, p))),
            jnp.pad(b1, ((0, 0), (0, p))),
            jnp.pad(w2, ((0, p), (0, p))),
            jnp.pad(b2, ((0, 0), (0, p))),
            jnp.pad(w3[:, 0][None, :], ((0, 0), (0, p))),   # [1, h_pad] row vector
            b3.reshape(1))                                  # (1,) scalar (SMEM)


def e2ecr_forward(embeds, starts, ends, attn_params, mention_params, pair_params):
    pa = pad_score_params(attn_params)
    pm = pad_score_params(mention_params)
    pp = pad_score_params(pair_params)
    attns = score_mlp(embeds, pa)[..., None]               # [B, T, 1]
    g = build_span_embeds(embeds, attns, starts, ends)     # [B, S, 3E]
    m = score_mlp(g, pm)                                   # [B, S] mention scores
    return pair_score(g, m, pp)                            # [B, S, S] in [0, 1]


# --------------------------------------------------------------------------
# Deterministic parameter init (PyTorch Linear-style uniform) + pure-JAX reference.
# --------------------------------------------------------------------------
def init_score_params(key, in_dim, hidden=HIDDEN):
    ks = jax.random.split(key, 6)

    def lin(kw, kb, fi, fo):
        lim = 1.0 / float(np.sqrt(fi))
        w = jax.random.uniform(kw, (fi, fo), jnp.float32, -lim, lim)
        b = jax.random.uniform(kb, (1, fo), jnp.float32, -lim, lim)
        return w, b

    w1, b1 = lin(ks[0], ks[1], in_dim, hidden)
    w2, b2 = lin(ks[2], ks[3], hidden, hidden)
    w3, b3 = lin(ks[4], ks[5], hidden, 1)
    return (w1, b1, w2, b2, w3, b3)


def _mlp_ref(x, params):
    w1, b1, w2, b2, w3, b3 = params
    hi = jax.lax.Precision.HIGHEST
    h = jax.nn.relu(jnp.matmul(x, w1, precision=hi) + b1)
    h = jax.nn.relu(jnp.matmul(h, w2, precision=hi) + b2)
    return jnp.matmul(h, w3, precision=hi) + b3


def e2ecr_ref(embeds, starts, ends, pa, pm, pp):
    attns = _mlp_ref(embeds, pa)
    g = build_span_embeds(embeds, attns, starts, ends)
    m = _mlp_ref(g, pm)[..., 0]                              # [B,S]
    B, S, G = g.shape
    gi = jnp.broadcast_to(g[:, :, None, :], (B, S, S, G))
    gj = jnp.broadcast_to(g[:, None, :, :], (B, S, S, G))
    x = jnp.concatenate([gi, gj, gi * gj], axis=-1)
    p = _mlp_ref(x, pp)[..., 0]                              # [B,S,S]
    ext = (m[:, :, None] + m[:, None, :] + p) / 3.0
    return jnp.clip(ext, 0.0, 1.0)


if __name__ == "__main__":
    B, T, E, S = 2, 16, 32, 8
    gi_dim, gij_dim = 3 * E, 9 * E

    key = jax.random.PRNGKey(0)
    k_x, k_a, k_m, k_p = jax.random.split(key, 4)

    encoded_docs = jax.random.normal(k_x, (B, T, E), jnp.float32)

    # Spans (inclusive TokenRange start/end), same count per document.
    starts = jnp.tile(jnp.arange(0, 2 * S, 2, dtype=jnp.int32)[None, :], (B, 1))  # [B,S]
    ends = starts + 1

    attn_params = init_score_params(k_a, E)
    mention_params = init_score_params(k_m, gi_dim)
    pair_params = init_score_params(k_p, gij_dim)

    coref = e2ecr_forward(encoded_docs, starts, ends,
                          attn_params, mention_params, pair_params)
    coref = jax.block_until_ready(coref)
    assert coref.shape == (B, S, S), coref.shape

    ref = e2ecr_ref(encoded_docs, starts, ends,
                    attn_params, mention_params, pair_params)
    np.testing.assert_allclose(np.asarray(coref), np.asarray(ref),
                               rtol=1e-2, atol=1e-2)

    print("KERNEL_OK")
</pallas_src>

<mosaic_0001>
module attributes {stable_mosaic.version = 11 : i64} {
  func.func @_score_kernel(%arg0: i32, %arg1: memref<32x32xf32, #tpu.memory_space<vmem>>, %arg2: memref<32x256xf32, #tpu.memory_space<vmem>>, %arg3: memref<1x256xf32, #tpu.memory_space<vmem>>, %arg4: memref<256x256xf32, #tpu.memory_space<vmem>>, %arg5: memref<1x256xf32, #tpu.memory_space<vmem>>, %arg6: memref<1x256xf32, #tpu.memory_space<vmem>>, %arg7: memref<1xf32, #tpu.memory_space<smem>>, %arg8: memref<1x32xf32, #tpu.memory_space<vmem>>) attributes {dimension_semantics = [#tpu.dimension_semantics<parallel>], iteration_bounds = array<i64: 1>, scalar_prefetch = 0 : i64, scratch_operands = 0 : i64, tpu.core_type = #tpu.core_type<tc>, window_params = [{transform_indices = @transform_0, window_bounds = array<i64: 32, 32>}, {pipeline_mode = #tpu.pipeline_mode<synchronous>, transform_indices = @transform_1, window_bounds = array<i64: 32, 256>}, {pipeline_mode = #tpu.pipeline_mode<synchronous>, transform_indices = @transform_2, window_bounds = array<i64: 1, 256>}, {pipeline_mode = #tpu.pipeline_mode<synchronous>, transform_indices = @transform_3, window_bounds = array<i64: 256, 256>}, {pipeline_mode = #tpu.pipeline_mode<synchronous>, transform_indices = @transform_4, window_bounds = array<i64: 1, 256>}, {pipeline_mode = #tpu.pipeline_mode<synchronous>, transform_indices = @transform_5, window_bounds = array<i64: 1, 256>}, {transform_indices = @transform_6, window_bounds = array<i64: 1>}, {transform_indices = @transform_7, window_bounds = array<i64: 1, 32>}]} {
    %c0 = arith.constant 0 : index
    %c0_0 = arith.constant 0 : index
    %0 = vector.load %arg1[%c0, %c0_0] : memref<32x32xf32, #tpu.memory_space<vmem>>, vector<32x32xf32>
    %c0_1 = arith.constant 0 : index
    %c0_2 = arith.constant 0 : index
    %1 = vector.load %arg2[%c0_1, %c0_2] : memref<32x256xf32, #tpu.memory_space<vmem>>, vector<32x256xf32>
    %cst = arith.constant dense<0.000000e+00> : vector<32x256xf32>
    %2 = tpu.matmul %0, %1, %cst {dimension_numbers = #tpu.dot_dimension_numbers<[1], [0], [0], [1], [0, 0, 1, 1], [], []>} : vector<32x32xf32>, vector<32x256xf32>, vector<32x256xf32> -> vector<32x256xf32>
    %c0_3 = arith.constant 0 : index
    %c0_4 = arith.constant 0 : index
    %3 = vector.load %arg3[%c0_3, %c0_4] : memref<1x256xf32, #tpu.memory_space<vmem>>, vector<1x256xf32>
    %4 = vector.broadcast %3 : vector<1x256xf32> to vector<32x256xf32>
    %5 = arith.addf %2, %4 : vector<32x256xf32>
    %cst_5 = arith.constant 0.000000e+00 : f32
    %6 = vector.broadcast %cst_5 : f32 to vector<32x256xf32>
    %7 = arith.maximumf %5, %6 : vector<32x256xf32>
    %c0_6 = arith.constant 0 : index
    %c0_7 = arith.constant 0 : index
    %8 = vector.load %arg4[%c0_6, %c0_7] : memref<256x256xf32, #tpu.memory_space<vmem>>, vector<256x256xf32>
    %cst_8 = arith.constant dense<0.000000e+00> : vector<32x256xf32>
    %9 = tpu.matmul %7, %8, %cst_8 {dimension_numbers = #tpu.dot_dimension_numbers<[1], [0], [0], [1], [0, 0, 1, 1], [], []>} : vector<32x256xf32>, vector<256x256xf32>, vector<32x256xf32> -> vector<32x256xf32>
    %c0_9 = arith.constant 0 : index
    %c0_10 = arith.constant 0 : index
    %10 = vector.load %arg5[%c0_9, %c0_10] : memref<1x256xf32, #tpu.memory_space<vmem>>, vector<1x256xf32>
    %11 = vector.broadcast %10 : vector<1x256xf32> to vector<32x256xf32>
    %12 = arith.addf %9, %11 : vector<32x256xf32>
    %cst_11 = arith.constant 0.000000e+00 : f32
    %13 = vector.broadcast %cst_11 : f32 to vector<32x256xf32>
    %14 = arith.maximumf %12, %13 : vector<32x256xf32>
    %c0_12 = arith.constant 0 : index
    %c0_13 = arith.constant 0 : index
    %15 = vector.load %arg6[%c0_12, %c0_13] : memref<1x256xf32, #tpu.memory_space<vmem>>, vector<1x256xf32>
    %16 = vector.broadcast %15 : vector<1x256xf32> to vector<32x256xf32>
    %17 = arith.mulf %14, %16 : vector<32x256xf32>
    %cst_14 = arith.constant dense<0.000000e+00> : vector<32xf32>
    %18 = vector.multi_reduction <add>, %17, %cst_14 [1] : vector<32x256xf32> to vector<32xf32>
    %c0_15 = arith.constant 0 : index
    %19 = memref.load %arg7[%c0_15] : memref<1xf32, #tpu.memory_space<smem>>
    %20 = vector.broadcast %19 : f32 to vector<32xf32>
    %21 = arith.addf %18, %20 : vector<32xf32>
    %c0_16 = arith.constant 0 : index
    %c0_17 = arith.constant 0 : index
    %22 = vector.load %arg8[%c0_16, %c0_17] : memref<1x32xf32, #tpu.memory_space<vmem>>, vector<1x32xf32>
    %23 = vector.shape_cast %22 : vector<1x32xf32> to vector<32xf32>
    %24 = vector.shape_cast %21 : vector<32xf32> to vector<1x32xf32>
    tpu.vector_store %arg8[%c0_16, %c0_17], %24 {strides = array<i32>} : memref<1x32xf32, #tpu.memory_space<vmem>>, vector<1x32xf32>,
    return
  }
  func.func @transform_0(%arg0: i32) -> (i32, i32) {
    %c0_i32 = arith.constant 0 : i32
    %c0_i32_0 = arith.constant 0 : i32
    return %arg0, %c0_i32 : i32, i32
  }
  func.func @transform_1(%arg0: i32) -> (i32, i32) {
    %c0_i32 = arith.constant 0 : i32
    %c0_i32_0 = arith.constant 0 : i32
    %c0_i32_1 = arith.constant 0 : i32
    return %c0_i32, %c0_i32_0 : i32, i32
  }
  func.func @transform_2(%arg0: i32) -> (i32, i32) {
    %c0_i32 = arith.constant 0 : i32
    %c0_i32_0 = arith.constant 0 : i32
    %c0_i32_1 = arith.constant 0 : i32
    return %c0_i32, %c0_i32_0 : i32, i32
  }
  func.func @transform_3(%arg0: i32) -> (i32, i32) {
    %c0_i32 = arith.constant 0 : i32
    %c0_i32_0 = arith.constant 0 : i32
    %c0_i32_1 = arith.constant 0 : i32
    return %c0_i32, %c0_i32_0 : i32, i32
  }
  func.func @transform_4(%arg0: i32) -> (i32, i32) {
    %c0_i32 = arith.constant 0 : i32
    %c0_i32_0 = arith.constant 0 : i32
    %c0_i32_1 = arith.constant 0 : i32
    return %c0_i32, %c0_i32_0 : i32, i32
  }
  func.func @transform_5(%arg0: i32) -> (i32, i32) {
    %c0_i32 = arith.constant 0 : i32
    %c0_i32_0 = arith.constant 0 : i32
    %c0_i32_1 = arith.constant 0 : i32
    return %c0_i32, %c0_i32_0 : i32, i32
  }
  func.func @transform_6(%arg0: i32) -> i32 {
    %c0_i32 = arith.constant 0 : i32
    %c0_i32_0 = arith.constant 0 : i32
    return %c0_i32 : i32
  }
  func.func @transform_7(%arg0: i32) -> (i32, i32) {
    %c0_i32 = arith.constant 0 : i32
    %c0_i32_0 = arith.constant 0 : i32
    return %c0_i32, %arg0 : i32, i32
  }
}

</mosaic_0001>

<llo_original>
// kernel: tpu_custom_call.1
$region0: #{tpu_custom_call.1}
  #allocation0 [shape = 'u32[]', space=smem, size = 0x4, offset = 0x4, fixed_abs, tag = 'smem constant byte address 0x4 - core index']
  #allocation1 [shape = 'u32[144,128]{1,0:T(1,128)}', space=vmem, size = 0x12000, scoped, tag = 'internal scratch']
  #allocation2 [shape = 'f32[1]{0:T(128)S(6)}', space=smem, size = 0x200, scoped, tag = 'scoped memory for tpu_custom_call.1']
  %s0 = inlined_call_operand.hbm [shape: f32[32,32], index: 0, kind: input, shape index: {}]
  %s1 = inlined_call_operand.hbm [shape: f32[32,256], index: 1, kind: input, shape index: {}]
  %s2 = inlined_call_operand.vmem [shape: f32[1,256], index: 2, kind: input, shape index: {}]
  %s3 = inlined_call_operand.hbm [shape: f32[256,256], index: 3, kind: input, shape index: {}]
  %s4 = inlined_call_operand.vmem [shape: f32[1,256], index: 4, kind: input, shape index: {}]
  %s5 = inlined_call_operand.vmem [shape: f32[1,256], index: 5, kind: input, shape index: {}]
  %s6 = inlined_call_operand.<no memory space> [shape: f32[1], index: 6, kind: input, shape index: {}]
  %s7 = inlined_call_operand.hbm [shape: f32[1,32], index: 7, kind: output, shape index: {}]
  %s8 = sld [smem:[#allocation0]]
  $region50: #{tpu_custom_call.1} parent=0
    _
  %s10 = ssub.s32 1, %s8
  %s11 = scalar_select 0, %s10, %s8
  %12 = sst [smem:[#allocation2]] %s6
  $region1: #{tpu_custom_call.1} parent=0
    #allocation3 [shape = 'u8[16384]{0}', space=vmem, size = 0x4000, scoped, tag = 'input window, operand 0, single buffered']
    #allocation4 [shape = 's32[1]{0}', space=sflag, size = 0x4, scoped, tag = 'scoped memory for tpu_custom_call.1']
    #allocation5 [shape = 's32[1]{0}', space=sflag, size = 0x4, scoped, tag = 'scoped memory for tpu_custom_call.1']
    #allocation6 [shape = 'u8[32768]{0}', space=vmem, size = 0x8000, scoped, tag = 'input window, operand 1, single buffered']
    #allocation7 [shape = 's32[1]{0}', space=sflag, size = 0x4, scoped, tag = 'scoped memory for tpu_custom_call.1']
    #allocation8 [shape = 'u8[262144]{0}', space=vmem, size = 0x40000, scoped, tag = 'input window, operand 3, single buffered']
    #allocation9 [shape = 'u8[512]{0}', space=vmem, size = 0x400, scoped, tag = 'output window, operand 0, single buffered']
    %13 = vsyncpa [#allocation4], 0
    %14 = vsyncpa [#allocation7], 0
    %15 = vsyncpa [#allocation5], 0
    // Predicated region
    $region2: #{tpu_custom_call.1} parent=1 // pred_check
      _
    $region3: #{tpu_custom_call.1} parent=1 // pred_check_branch
      %17 = sbr.rel (0) target = $region5
    $region4: #{tpu_custom_call.1} parent=1 // pred_region
      %s19 = ssub.s32 512, 512
      %20 = vsyncadd [#allocation4], %s19
      %s21 = sshll.u32 [#allocation3], 4
      %s22 = int_to_ptr.vmem [resolvable:$true] %s21
      %27 = dma.hbm_to_vmem [thread:$0]  %s0, 512, %s22, [#allocation4], 128, 128, 8
    $region5: #{tpu_custom_call.1} parent=1 // pred_fallthru
      _
    // Predicated region
    $region6: #{tpu_custom_call.1} parent=1 // pred_check
      _
    $region7: #{tpu_custom_call.1} parent=1 // pred_check_branch
      %29 = sbr.rel (0) target = $region9
    $region8: #{tpu_custom_call.1} parent=1 // pred_region
      %s31 = ssub.s32 1024, 1024
      %32 = vsyncadd [#allocation7], %s31
      %s33 = sshll.u32 [#allocation6], 4
      %s34 = int_to_ptr.vmem [resolvable:$true] %s33
      %39 = dma.hbm_to_vmem [thread:$0]  %s1, 1024, %s34, [#allocation7], 256, 256, 16
    $region9: #{tpu_custom_call.1} parent=1 // pred_fallthru
      _
    // Predicated region
    $region10: #{tpu_custom_call.1} parent=1 // pred_check
      _
    $region11: #{tpu_custom_call.1} parent=1 // pred_check_branch
      %41 = sbr.rel (0) target = $region13
    $region12: #{tpu_custom_call.1} parent=1 // pred_region
      _
    $region13: #{tpu_custom_call.1} parent=1 // pred_fallthru
      _
    // Predicated region
    $region14: #{tpu_custom_call.1} parent=1 // pred_check
      _
    $region15: #{tpu_custom_call.1} parent=1 // pred_check_branch
      %43 = sbr.rel (0) target = $region17
    $region16: #{tpu_custom_call.1} parent=1 // pred_region
      %s45 = ssub.s32 8192, 8192
      %46 = vsyncadd [#allocation7], %s45
      %s47 = sshll.u32 [#allocation8], 4
      %s48 = int_to_ptr.vmem [resolvable:$true] %s47
      %53 = dma.hbm_to_vmem [thread:$0]  %s3, 8192, %s48, [#allocation7], 256, 256, 16
    $region17: #{tpu_custom_call.1} parent=1 // pred_fallthru
      _
    // Predicated region
    $region18: #{tpu_custom_call.1} parent=1 // pred_check
      _
    $region19: #{tpu_custom_call.1} parent=1 // pred_check_branch
      %55 = sbr.rel (0) target = $region21
    $region20: #{tpu_custom_call.1} parent=1 // pred_region
      _
    $region21: #{tpu_custom_call.1} parent=1 // pred_fallthru
      _
    // Predicated region
    $region22: #{tpu_custom_call.1} parent=1 // pred_check
      _
    $region23: #{tpu_custom_call.1} parent=1 // pred_check_branch
      %57 = sbr.rel (0) target = $region25
    $region24: #{tpu_custom_call.1} parent=1 // pred_region
      _
    $region25: #{tpu_custom_call.1} parent=1 // pred_fallthru
      _
    // Predicated region
    $region26: #{tpu_custom_call.1} parent=1 // pred_check
      _
    $region27: #{tpu_custom_call.1} parent=1 // pred_check_branch
      %59 = sbr.rel (0) target = $region29
    $region28: #{tpu_custom_call.1} parent=1 // pred_region
      _
    $region29: #{tpu_custom_call.1} parent=1 // pred_fallthru
      _
    // Predicated region
    $region30: #{tpu_custom_call.1} parent=1 // pred_check
      _
    $region31: #{tpu_custom_call.1} parent=1 // pred_check_branch
      %61 = sbr.rel (0) target = $region33
    $region32: #{tpu_custom_call.1} parent=1 // pred_region
      %62 = dma.done [#allocation4], 512
    $region33: #{tpu_custom_call.1} parent=1 // pred_fallthru
      _
    // Predicated region
    $region34: #{tpu_custom_call.1} parent=1 // pred_check
      _
    $region35: #{tpu_custom_call.1} parent=1 // pred_check_branch
      %64 = sbr.rel (0) target = $region37
    $region36: #{tpu_custom_call.1} parent=1 // pred_region
      %65 = dma.done [#allocation7], 1024
    $region37: #{tpu_custom_call.1} parent=1 // pred_fallthru
      _
    // Predicated region
    $region38: #{tpu_custom_call.1} parent=1 // pred_check
      _
    $region39: #{tpu_custom_call.1} parent=1 // pred_check_branch
      %67 = sbr.rel (0) target = $region41
    $region40: #{tpu_custom_call.1} parent=1 // pred_region
      %68 = dma.done [#allocation7], 8192
    $region41: #{tpu_custom_call.1} parent=1 // pred_fallthru
      _
    %v69 = vld [vmem:[#allocation3] sm:$0xff]
    %v70 = vld [vmem:[#allocation3 + $0x8] sm:$0xff]
    %v71 = vld [vmem:[#allocation3 + $0x10] sm:$0xff]
    %v72 = vld [vmem:[#allocation3 + $0x18] sm:$0xff]
    %v73 = vld [vmem:[#allocation6] sm:$0xff]
    %v74 = vld [vmem:[#allocation6 + $0x8] sm:$0xff]
    %v75 = vld [vmem:[#allocation6 + $0x10] sm:$0xff]
    %v76 = vld [vmem:[#allocation6 + $0x18] sm:$0xff]
    %v77 = vld [vmem:[#allocation6 + $0x20] sm:$0xff]
    %v78 = vld [vmem:[#allocation6 + $0x28] sm:$0xff]
    %v79 = vld [vmem:[#allocation6 + $0x30] sm:$0xff]
    %v80 = vld [vmem:[#allocation6 + $0x38] sm:$0xff]
    %v81 = vld [vmem:[%s2] sm:$0x3]
    %v83 = vlaneseq
    %v84 = vshrl.u32 %v83, 7
    %v85 = vsub.s32 0, %v84
    %v86 = vrot.slane %v81, %v85
    %v87 = vlaneseq
    %v88 = vshrl.u32 %v87, 7
    %v89 = vsub.s32 1, %v88
    %v90 = vrot.slane %v81, %v89
    %vm93 = vcmask 261120
    %v95 = vsel %vm93, %v69, 0
    %v98 = vsel %vm93, %v70, 0
    %v101 = vsel %vm93, %v71, 0
    %v104 = vsel %vm93, %v72, 0
    %106 = vmatprep.subr.mxu0 %v74
    %107 = vmatpush1.msra.mxu0 %v73
    %108 = vmatprep.subr.mxu0 %v76
    %109 = vmatpush1.msra.mxu0 %v75
    %110 = vmatprep.subr.mxu0 %v78
    %111 = vmatpush1.msra.mxu0 %v77
    %112 = vmatprep.subr.mxu0 %v80
    %113 = vmatpush1.msra.mxu0 %v79
    %114 = vmatprep.subr.mxu0 0.0
    %115 = vmatpush1.msra.mxu0 0.0
    %116 = vmatprep.subr.mxu0 0.0
    %117 = vmatpush1.msra.mxu0 0.0
    %118 = vmatprep.subr.mxu0 0.0
    %119 = vmatpush1.msra.mxu0 0.0
    %120 = vmatprep.subr.mxu0 0.0
    %121 = vmatpush1.msra.mxu0 0.0
    %122 = vmatprep.subr.mxu0 0.0
    %123 = vmatpush1.msra.mxu0 0.0
    %124 = vmatprep.subr.mxu0 0.0
    %125 = vmatpush1.msra.mxu0 0.0
    %126 = vmatprep.subr.mxu0 0.0
    %127 = vmatpush1.msra.mxu0 0.0
    %128 = vmatprep.subr.mxu0 0.0
    %129 = vmatpush1.msra.mxu0 0.0
    %130 = vmatprep.subr.mxu0 0.0
    %131 = vmatpush1.msra.mxu0 0.0
    %132 = vmatprep.subr.mxu0 0.0
    %133 = vmatpush1.msra.mxu0 0.0
    %134 = vmatprep.subr.mxu0 0.0
    %135 = vmatpush1.msra.mxu0 0.0
    %136 = vmatprep.subr.mxu0 0.0
    %137 = vmatpush1.msra.mxu0 0.0
    %138 = vmatprep.subr.mxu0 0.0
    %139 = vmatpush1.msra.mxu0 0.0
    %140 = vmatprep.subr.mxu0 0.0
    %141 = vmatpush1.msra.mxu0 0.0
    %142 = vmatprep.subr.mxu0 0.0
    %143 = vmatpush1.msra.mxu0 0.0
    %144 = vmatprep.subr.mxu0 0.0
    %145 = vmatpush1.msra.mxu0 0.0
    %146 = vmatprep.subr.mxu0 0.0
    %147 = vmatpush1.msra.mxu0 0.0
    %148 = vmatprep.subr.mxu0 0.0
    %149 = vmatpush1.msra.mxu0 0.0
    %150 = vmatprep.subr.mxu0 0.0
    %151 = vmatpush1.msra.mxu0 0.0
    %152 = vmatprep.subr.mxu0 0.0
    %153 = vmatpush1.msra.mxu0 0.0
    %154 = vmatprep.subr.mxu0 0.0
    %155 = vmatpush1.msra.mxu0 0.0
    %156 = vmatprep.subr.mxu0 0.0
    %157 = vmatpush1.msra.mxu0 0.0
    %158 = vmatprep.subr.mxu0 0.0
    %159 = vmatpush1.msra.mxu0 0.0
    %160 = vmatprep.subr.mxu0 0.0
    %161 = vmatpush1.msra.mxu0 0.0
    %162 = vmatprep.subr.mxu0 0.0
    %163 = vmatpush1.msra.mxu0 0.0
    %164 = vmatprep.subr.mxu0 0.0
    %165 = vmatpush1.msra.mxu0 0.0
    %166 = vmatprep.subr.mxu0 0.0
    %167 = vmatpush1.msra.mxu0 0.0
    %168 = vmatprep.subr.mxu0 0.0
    %169 = vmatpush1.msra.mxu0 0.0
    %170 = vmatprep.mubr.f32.mxu0 0.0
    %171 = vmatmul.mubr.f32.gmra.mrb[0].mxu0 %v95
    %v172 = vpop.f32.mrb[0].mxu0
    %v173 = vadd.f32 %v86, %v172
    %v174 = vpop.f32.mrb[0].mxu0
    %v175 = vadd.f32 %v90, %v174
    %176 = vmatprep.mubr.f32.mxu0 0.0
    %177 = vmatmul.mubr.f32.gmra.mrb[0].mxu0 %v98
    %v178 = vpop.f32.mrb[0].mxu0
    %v179 = vadd.f32 %v86, %v178
    %v180 = vpop.f32.mrb[0].mxu0
    %v181 = vadd.f32 %v90, %v180
    %182 = vmatprep.mubr.f32.mxu0 0.0
    %183 = vmatmul.mubr.f32.gmra.mrb[0].mxu0 %v101
    %v184 = vpop.f32.mrb[0].mxu0
    %v185 = vadd.f32 %v86, %v184
    %v186 = vpop.f32.mrb[0].mxu0
    %v187 = vadd.f32 %v90, %v186
    %188 = vmatprep.mubr.f32.mxu0 0.0
    %189 = vmatmul.mubr.f32.gmra.mrb[0].mxu0 %v104
    %v190 = vpop.f32.mrb[0].mxu0
    %v191 = vadd.f32 %v86, %v190
    %v192 = vpop.f32.mrb[0].mxu0
    %v193 = vadd.f32 %v90, %v192
    %194 = vdwg.mxu0
    %v195 = vmax.f32 %v173, 0.0
    %v196 = vmax.f32 %v175, 0.0
    %v197 = vmax.f32 %v179, 0.0
    %v198 = vmax.f32 %v181, 0.0
    %v199 = vmax.f32 %v185, 0.0
    %v200 = vmax.f32 %v187, 0.0
    %v201 = vmax.f32 %v191, 0.0
    %v202 = vmax.f32 %v193, 0.0
    %v203 = vld [vmem:[#allocation8] sm:$0xff]
    %v204 = vld [vmem:[#allocation8 + $0x8] sm:$0xff]
    %v205 = vld [vmem:[#allocation8 + $0x10] sm:$0xff]
    %v206 = vld [vmem:[#allocation8 + $0x18] sm:$0xff]
    %v207 = vld [vmem:[#allocation8 + $0x20] sm:$0xff]
    %v208 = vld [vmem:[#allocation8 + $0x28] sm:$0xff]
    %v209 = vld [vmem:[#allocation8 + $0x30] sm:$0xff]
    %v210 = vld [vmem:[#allocation8 + $0x38] sm:$0xff]
    %v211 = vld [vmem:[#allocation8 + $0x40] sm:$0xff]
    %v212 = vld [vmem:[#allocation8 + $0x48] sm:$0xff]
    %v213 = vld [vmem:[#allocation8 + $0x50] sm:$0xff]
    %v214 = vld [vmem:[#allocation8 + $0x58] sm:$0xff]
    %v215 = vld [vmem:[#allocation8 + $0x60] sm:$0xff]
    %v216 = vld [vmem:[#allocation8 + $0x68] sm:$0xff]
    %v217 = vld [vmem:[#allocation8 + $0x70] sm:$0xff]
    %v218 = vld [vmem:[#allocation8 + $0x78] sm:$0xff]
    %v219 = vld [vmem:[#allocation8 + $0x80] sm:$0xff]
    %v220 = vld [vmem:[#allocation8 + $0x88] sm:$0xff]
    %v221 = vld [vmem:[#allocation8 + $0x90] sm:$0xff]
    %v222 = vld [vmem:[#allocation8 + $0x98] sm:$0xff]
    %v223 = vld [vmem:[#allocation8 + $0xa0] sm:$0xff]
    %v224 = vld [vmem:[#allocation8 + $0xa8] sm:$0xff]
    %v225 = vld [vmem:[#allocation8 + $0xb0] sm:$0xff]
    %v226 = vld [vmem:[#allocation8 + $0xb8] sm:$0xff]
    %v227 = vld [vmem:[#allocation8 + $0xc0] sm:$0xff]
    %v228 = vld [vmem:[#allocation8 + $0xc8] sm:$0xff]
    %v229 = vld [vmem:[#allocation8 + $0xd0] sm:$0xff]
    %v230 = vld [vmem:[#allocation8 + $0xd8] sm:$0xff]
    %v231 = vld [vmem:[#allocation8 + $0xe0] sm:$0xff]
    %v232 = vld [vmem:[#allocation8 + $0xe8] sm:$0xff]
    %v233 = vld [vmem:[#allocation8 + $0xf0] sm:$0xff]
    %v234 = vld [vmem:[#allocation8 + $0xf8] sm:$0xff]
    %v235 = vld [vmem:[#allocation8 + $0x100] sm:$0xff]
    %v236 = vld [vmem:[#allocation8 + $0x108] sm:$0xff]
    %v237 = vld [vmem:[#allocation8 + $0x110] sm:$0xff]
    %v238 = vld [vmem:[#allocation8 + $0x118] sm:$0xff]
    %v239 = vld [vmem:[#allocation8 + $0x120] sm:$0xff]
    %v240 = vld [vmem:[#allocation8 + $0x128] sm:$0xff]
    %v241 = vld [vmem:[#allocation8 + $0x130] sm:$0xff]
    %v242 = vld [vmem:[#allocation8 + $0x138] sm:$0xff]
    %v243 = vld [vmem:[#allocation8 + $0x140] sm:$0xff]
    %v244 = vld [vmem:[#allocation8 + $0x148] sm:$0xff]
    %v245 = vld [vmem:[#allocation8 + $0x150] sm:$0xff]
    %v246 = vld [vmem:[#allocation8 + $0x158] sm:$0xff]
    %v247 = vld [vmem:[#allocation8 + $0x160] sm:$0xff]
    %v248 = vld [vmem:[#allocation8 + $0x168] sm:$0xff]
    %v249 = vld [vmem:[#allocation8 + $0x170] sm:$0xff]
    %v250 = vld [vmem:[#allocation8 + $0x178] sm:$0xff]
    %v251 = vld [vmem:[#allocation8 + $0x180] sm:$0xff]
    %v252 = vld [vmem:[#allocation8 + $0x188] sm:$0xff]
    %v253 = vld [vmem:[#allocation8 + $0x190] sm:$0xff]
    %v254 = vld [vmem:[#allocation8 + $0x198] sm:$0xff]
    %v255 = vld [vmem:[#allocation8 + $0x1a0] sm:$0xff]
    %v256 = vld [vmem:[#allocation8 + $0x1a8] sm:$0xff]
    %v257 = vld [vmem:[#allocation8 + $0x1b0] sm:$0xff]
    %v258 = vld [vmem:[#allocation8 + $0x1b8] sm:$0xff]
    %v259 = vld [vmem:[#allocation8 + $0x1c0] sm:$0xff]
    %v260 = vld [vmem:[#allocation8 + $0x1c8] sm:$0xff]
    %v261 = vld [vmem:[#allocation8 + $0x1d0] sm:$0xff]
    %v262 = vld [vmem:[#allocation8 + $0x1d8] sm:$0xff]
    %v263 = vld [vmem:[#allocation8 + $0x1e0] sm:$0xff]
    %v264 = vld [vmem:[#allocation8 + $0x1e8] sm:$0xff]
    %v265 = vld [vmem:[#allocation8 + $0x1f0] sm:$0xff]
    %v266 = vld [vmem:[#allocation8 + $0x1f8] sm:$0xff]
    %v267 = vld [vmem:[%s4] sm:$0x3]
    %v269 = vlaneseq
    %v270 = vshrl.u32 %v269, 7
    %v271 = vsub.s32 0, %v270
    %v272 = vrot.slane %v267, %v271
    %v273 = vlaneseq
    %v274 = vshrl.u32 %v273, 7
    %v275 = vsub.s32 1, %v274
    %v276 = vrot.slane %v267, %v275
    %279 = vmatprep.subr.mxu0 %v204
    %280 = vmatpush1.msra.mxu0 %v203
    %281 = vmatprep.subr.mxu0 %v206
    %282 = vmatpush1.msra.mxu0 %v205
    %283 = vmatprep.subr.mxu0 %v208
    %284 = vmatpush1.msra.mxu0 %v207
    %285 = vmatprep.subr.mxu0 %v210
    %286 = vmatpush1.msra.mxu0 %v209
    %287 = vmatprep.subr.mxu0 %v212
    %288 = vmatpush1.msra.mxu0 %v211
    %289 = vmatprep.subr.mxu0 %v214
    %290 = vmatpush1.msra.mxu0 %v213
    %291 = vmatprep.subr.mxu0 %v216
    %292 = vmatpush1.msra.mxu0 %v215
    %293 = vmatprep.subr.mxu0 %v218
    %294 = vmatpush1.msra.mxu0 %v217
    %295 = vmatprep.subr.mxu0 %v220
    %296 = vmatpush1.msra.mxu0 %v219
    %297 = vmatprep.subr.mxu0 %v222
    %298 = vmatpush1.msra.mxu0 %v221
    %299 = vmatprep.subr.mxu0 %v224
    %300 = vmatpush1.msra.mxu0 %v223
    %301 = vmatprep.subr.mxu0 %v226
    %302 = vmatpush1.msra.mxu0 %v225
    %303 = vmatprep.subr.mxu0 %v228
    %304 = vmatpush1.msra.mxu0 %v227
    %305 = vmatprep.subr.mxu0 %v230
    %306 = vmatpush1.msra.mxu0 %v229
    %307 = vmatprep.subr.mxu0 %v232
    %308 = vmatpush1.msra.mxu0 %v231
    %309 = vmatprep.subr.mxu0 %v234
    %310 = vmatpush1.msra.mxu0 %v233
    %311 = vmatprep.subr.mxu0 %v236
    %312 = vmatpush1.msra.mxu0 %v235
    %313 = vmatprep.subr.mxu0 %v238
    %314 = vmatpush1.msra.mxu0 %v237
    %315 = vmatprep.subr.mxu0 %v240
    %316 = vmatpush1.msra.mxu0 %v239
    %317 = vmatprep.subr.mxu0 %v242
    %318 = vmatpush1.msra.mxu0 %v241
    %319 = vmatprep.subr.mxu0 %v244
    %320 = vmatpush1.msra.mxu0 %v243
    %321 = vmatprep.subr.mxu0 %v246
    %322 = vmatpush1.msra.mxu0 %v245
    %323 = vmatprep.subr.mxu0 %v248
    %324 = vmatpush1.msra.mxu0 %v247
    %325 = vmatprep.subr.mxu0 %v250
    %326 = vmatpush1.msra.mxu0 %v249
    %327 = vmatprep.subr.mxu0 %v252
    %328 = vmatpush1.msra.mxu0 %v251
    %329 = vmatprep.subr.mxu0 %v254
    %330 = vmatpush1.msra.mxu0 %v253
    %331 = vmatprep.subr.mxu0 %v256
    %332 = vmatpush1.msra.mxu0 %v255
    %333 = vmatprep.subr.mxu0 %v258
    %334 = vmatpush1.msra.mxu0 %v257
    %335 = vmatprep.subr.mxu0 %v260
    %336 = vmatpush1.msra.mxu0 %v259
    %337 = vmatprep.subr.mxu0 %v262
    %338 = vmatpush1.msra.mxu0 %v261
    %339 = vmatprep.subr.mxu0 %v264
    %340 = vmatpush1.msra.mxu0 %v263
    %341 = vmatprep.subr.mxu0 %v266
    %342 = vmatpush1.msra.mxu0 %v265
    %343 = vmatprep.mubr.f32.mxu0 %v196
    %344 = vmatmul.mubr.f32.gmra.mrb[0].mxu0 %v195
    %v345 = vpop.f32.mrb[0].mxu0
    %v346 = vadd.f32 %v272, %v345
    %v347 = vpop.f32.mrb[0].mxu0
    %v348 = vadd.f32 %v276, %v347
    %349 = vmatprep.mubr.f32.mxu0 %v198
    %350 = vmatmul.mubr.f32.gmra.mrb[0].mxu0 %v197
    %v351 = vpop.f32.mrb[0].mxu0
    %v352 = vadd.f32 %v272, %v351
    %v353 = vpop.f32.mrb[0].mxu0
    %v354 = vadd.f32 %v276, %v353
    %355 = vmatprep.mubr.f32.mxu0 %v200
    %356 = vmatmul.mubr.f32.gmra.mrb[0].mxu0 %v199
    %v357 = vpop.f32.mrb[0].mxu0
    %v358 = vadd.f32 %v272, %v357
    %v359 = vpop.f32.mrb[0].mxu0
    %v360 = vadd.f32 %v276, %v359
    %361 = vmatprep.mubr.f32.mxu0 %v202
    %362 = vmatmul.mubr.f32.gmra.mrb[0].mxu0 %v201
    %v363 = vpop.f32.mrb[0].mxu0
    %v364 = vadd.f32 %v272, %v363
    %v365 = vpop.f32.mrb[0].mxu0
    %v366 = vadd.f32 %v276, %v365
    %367 = vdwg.mxu0
    %v368 = vmax.f32 %v346, 0.0
    %v369 = vmax.f32 %v348, 0.0
    %v370 = vmax.f32 %v352, 0.0
    %v371 = vmax.f32 %v354, 0.0
    %v372 = vmax.f32 %v358, 0.0
    %v373 = vmax.f32 %v360, 0.0
    %v374 = vmax.f32 %v364, 0.0
    %v375 = vmax.f32 %v366, 0.0
    %v376 = vld [vmem:[%s5] sm:$0x3]
    %v378 = vlaneseq
    %v379 = vshrl.u32 %v378, 7
    %v380 = vsub.s32 0, %v379
    %v381 = vrot.slane %v376, %v380
    %v382 = vlaneseq
    %v383 = vshrl.u32 %v382, 7
    %v384 = vsub.s32 1, %v383
    %v385 = vrot.slane %v376, %v384
    %v388 = vmul.f32 %v368, %v381
    %v389 = vmul.f32 %v369, %v385
    %v390 = vmul.f32 %v370, %v381
    %v391 = vmul.f32 %v371, %v385
    %v392 = vmul.f32 %v372, %v381
    %v393 = vmul.f32 %v373, %v385
    %v394 = vmul.f32 %v374, %v381
    %v395 = vmul.f32 %v375, %v385
    %v396 = vadd.f32 %v388, %v389
    %397 = vadd.xlane.f32.xlu0 %v396
    %v398 = vpop.xlane.xlu0 %397
    %v399 = vadd.f32 %v390, %v391
    %400 = vadd.xlane.f32.xlu0 %v399
    %v401 = vpop.xlane.xlu0 %400
    %v402 = vadd.f32 %v392, %v393
    %403 = vadd.xlane.f32.xlu0 %v402
    %v404 = vpop.xlane.xlu0 %403
    %v405 = vadd.f32 %v394, %v395
    %406 = vadd.xlane.f32.xlu0 %v405
    %v407 = vpop.xlane.xlu0 %406
    %s408 = sld [smem:[#allocation2]]
    %v409 = vstv %s408
    %v410 = vadd.f32 %v398, %v409
    %v411 = vadd.f32 %v401, %v409
    %v412 = vadd.f32 %v404, %v409
    %v413 = vadd.f32 %v407, %v409
    %v418 = vlaneseq
    %v419 = vand.u32 %v418, 127
    %v420 = vlaneseq
    %v421 = vshrl.u32 %v420, 7
    %v422 = vsub.s32 %v419, %v421
    %v423 = vrot.slane %v410, %v422
    %v424 = vadd.s32 %v419, 4294967288
    %v425 = vlaneseq
    %v426 = vshrl.u32 %v425, 7
    %v427 = vsub.s32 %v424, %v426
    %v428 = vrot.slane %v411, %v427
    %vm429 = vcmask 130112
    %v430 = vsel %vm429, %v428, %v423
    %v431 = vadd.s32 %v419, 4294967280
    %v432 = vlaneseq
    %v433 = vshrl.u32 %v432, 7
    %v434 = vsub.s32 %v431, %v433
    %v435 = vrot.slane %v412, %v434
    %vm436 = vcmask 195712
    %v437 = vsel %vm436, %v435, %v430
    %v438 = vadd.s32 %v419, 4294967272
    %v439 = vlaneseq
    %v440 = vshrl.u32 %v439, 7
    %v441 = vsub.s32 %v438, %v440
    %v442 = vrot.slane %v413, %v441
    %vm443 = vcmask 261312
    %v444 = vsel %vm443, %v442, %v437
    %vm446 = vcmask 253952
    %447 = vst.msk [vmem:[#allocation9] sm:$0x1] %vm446, %v444
    // Predicated region
    $region42: #{tpu_custom_call.1} parent=1 // pred_check
      _
    $region43: #{tpu_custom_call.1} parent=1 // pred_check_branch
      %449 = sbr.rel (0) target = $region45
    $region44: #{tpu_custom_call.1} parent=1 // pred_region
      %s451 = ssub.s32 16, 16
      %452 = vsyncadd [#allocation5], %s451
      %s454 = sshll.u32 [#allocation9], 4
      %s455 = int_to_ptr.vmem [resolvable:$true] %s454
      %457 = dma.vmem_to_hbm [thread:$0]  %s455, 16, %s7, [#allocation5]
    $region45: #{tpu_custom_call.1} parent=1 // pred_fallthru
      _
    // Predicated region
    $region46: #{tpu_custom_call.1} parent=1 // pred_check
      _
    $region47: #{tpu_custom_call.1} parent=1 // pred_check_branch
      %459 = sbr.rel (0) target = $region49
    $region48: #{tpu_custom_call.1} parent=1 // pred_region
      %460 = dma.done [#allocation5], 16
    $region49: #{tpu_custom_call.1} parent=1 // pred_fallthru
      _
    %461 = vsyncpa [#allocation4], 1
    %462 = vsyncpa [#allocation7], 1
    %463 = vsyncpa [#allocation5], 1

</llo_original>
